<compile_context>
chip_gen: v5e
topology: v5e:2x2
jax: 0.10.0
libtpu: 0.0.40
codegen_flags: <defaults>
</compile_context>

<pallas_src>
from typing import NamedTuple

import jax
import jax.numpy as jnp
from jax.experimental import pallas as pl
from jax.experimental.pallas import tpu as pltpu


_VMEM_WORKING_SET_BUDGET = 24 * 1024 * 1024   # double-buffered tiles, all arrays
_VMEM_LIMIT_BYTES = 48 * 1024 * 1024          # explicit scoped-VMEM limit


def _round_up(x, m):
    return (x + m - 1) // m * m


# ---------------------------------------------------------------------------
# Kernels
# ---------------------------------------------------------------------------

def _adain_kernel_single(x_ref, ww_ref, wb_ref, bw_ref, bb_ref, ow_ref, ob_ref):
    """Single K step: fused matmul + bias + ReLU, no init/epilogue gating."""
    x = x_ref[...].astype(ww_ref.dtype)          # in-kernel cast (VPU, free under MXU)
    yw = jnp.dot(x, ww_ref[...], preferred_element_type=jnp.float32)
    yb = jnp.dot(x, wb_ref[...], preferred_element_type=jnp.float32)
    ow_ref[...] = jnp.maximum(yw + bw_ref[...], 0.0).astype(ow_ref.dtype)
    ob_ref[...] = jnp.maximum(yb + bb_ref[...], 0.0).astype(ob_ref.dtype)


def _adain_kernel_multik_inplace(x_ref, ww_ref, wb_ref, bw_ref, bb_ref,
                                 ow_ref, ob_ref):
    """Multi K step, f32 outputs: outputs double as accumulators (their block
    index is k-invariant, so they stay VMEM-resident across the K axis)."""
    k = pl.program_id(2)

    @pl.when(k == 0)
    def _():
        ow_ref[...] = jnp.zeros_like(ow_ref)
        ob_ref[...] = jnp.zeros_like(ob_ref)

    x = x_ref[...].astype(ww_ref.dtype)
    ow_ref[...] += jnp.dot(x, ww_ref[...], preferred_element_type=jnp.float32)
    ob_ref[...] += jnp.dot(x, wb_ref[...], preferred_element_type=jnp.float32)

    @pl.when(k == pl.num_programs(2) - 1)
    def _():
        ow_ref[...] = jnp.maximum(ow_ref[...] + bw_ref[...], 0.0)
        ob_ref[...] = jnp.maximum(ob_ref[...] + bb_ref[...], 0.0)


def _adain_kernel_multik_scratch(x_ref, ww_ref, wb_ref, bw_ref, bb_ref,
                                 ow_ref, ob_ref, accw_ref, accb_ref):
    """Multi K step, non-f32 outputs: f32 scratch accumulators + cast epilogue."""
    k = pl.program_id(2)

    @pl.when(k == 0)
    def _():
        accw_ref[...] = jnp.zeros_like(accw_ref)
        accb_ref[...] = jnp.zeros_like(accb_ref)

    x = x_ref[...].astype(ww_ref.dtype)
    accw_ref[...] += jnp.dot(x, ww_ref[...], preferred_element_type=jnp.float32)
    accb_ref[...] += jnp.dot(x, wb_ref[...], preferred_element_type=jnp.float32)

    @pl.when(k == pl.num_programs(2) - 1)
    def _():
        ow_ref[...] = jnp.maximum(accw_ref[...] + bw_ref[...], 0.0).astype(ow_ref.dtype)
        ob_ref[...] = jnp.maximum(accb_ref[...] + bb_ref[...], 0.0).astype(ob_ref.dtype)


# ---------------------------------------------------------------------------
# Parameter prep (hoisted out of the per-call hot path)
# ---------------------------------------------------------------------------

class AdaINParams(NamedTuple):
    ww: jax.Array          # [k_pad, t_pad] compute-dtype weight cols, 'weight' half
    wb: jax.Array          # [k_pad, t_pad] compute-dtype weight cols, 'bias' half
    bw: jax.Array          # [1, t_pad] f32 bias, 'weight' half
    bb: jax.Array          # [1, t_pad] f32 bias, 'bias' half
    in_units: int
    target_units: int


def prepare_adain_params(weight, bias, *, compute_dtype=jnp.bfloat16):
    """weight: [2*T, in_units] (PyTorch nn.Linear layout), bias: [2*T].

    Do this ONCE per parameter update; the result is reused across calls so the
    kernel streams the minimal (bf16, pre-split, pre-padded) weight bytes."""
    two_t, K = weight.shape
    assert two_t % 2 == 0
    assert bias.shape == (two_t,)
    T = two_t // 2
    k_pad = _round_up(K, 128)
    t_pad = _round_up(T, 128)

    wt = weight.T                                  # [K, 2T] == W^T (done once)

    def prep_w(w):
        return jnp.pad(w, ((0, k_pad - K), (0, t_pad - T))).astype(compute_dtype)

    def prep_b(b):
        return jnp.pad(b.astype(jnp.float32).reshape(1, T), ((0, 0), (0, t_pad - T)))

    return AdaINParams(
        ww=prep_w(wt[:, :T]), wb=prep_w(wt[:, T:]),
        bw=prep_b(bias[:T]), bb=prep_b(bias[T:]),
        in_units=K, target_units=T)


# ---------------------------------------------------------------------------
# Tile selection from a VMEM working-set budget
# ---------------------------------------------------------------------------

def _select_tiles(B, k_pad, t_pad, x_bytes, w_bytes, out_bytes):
    # Sublane alignment for the output tile (f32: 8, bf16: 16).
    m_align = 8 if out_bytes >= 4 else (16 if out_bytes == 2 else 32)
    tm = min(512, _round_up(B, m_align))
    m_pad = _round_up(B, tm)
    m_blocks = m_pad // tm

    # N tile in 128-lane units; keep >= 2 parallel grid blocks when the M axis
    # has a single block, so both v7x TensorCores get work.
    nt = t_pad // 128
    cap = min(4, nt)                                   # tn <= 512
    if m_blocks == 1 and nt >= 2:
        cap = max(1, min(cap, nt // 2))
    tn = 128 * max(u for u in range(1, cap + 1) if nt % u == 0)

    # K tile: the largest divisor of k_pad (multiple of 128) whose
    # double-buffered working set fits the budget; for small/medium K this is
    # the full K (grid_k == 1 -> no reduction loop at all).
    nk = k_pad // 128
    acc_bytes = 0 if out_bytes >= 4 else 2 * tm * tn * 4
    fixed = 2 * (tm * tn * out_bytes) * 2 + acc_bytes + 2 * (8 * tn * 4) * 2
    tk = 128
    for u in range(nk, 0, -1):
        if nk % u:
            continue
        cand = 128 * u
        ws = fixed + (tm * cand * x_bytes + 2 * cand * tn * w_bytes) * 2
        if ws <= _VMEM_WORKING_SET_BUDGET:
            tk = cand
            break
    return tm, tn, tk, m_pad


# ---------------------------------------------------------------------------
# Per-call apply
# ---------------------------------------------------------------------------

def adain_linear_apply(params: AdaINParams, x, *, out_dtype=None):
    """x: [B, in_units]. Returns {'weight': [B, T], 'bias': [B, T]}."""
    B, K = x.shape
    assert K == params.in_units
    T = params.target_units
    k_pad, t_pad = params.ww.shape

    out_dtype = jnp.dtype(x.dtype if out_dtype is None else out_dtype)
    out_bytes = out_dtype.itemsize
    x_bytes = jnp.dtype(x.dtype).itemsize
    w_bytes = jnp.dtype(params.ww.dtype).itemsize

    tm, tn, tk, m_pad = _select_tiles(B, k_pad, t_pad, x_bytes, w_bytes, out_bytes)

    # Pad x only if actually needed (no dtype cast here — cast happens in-kernel).
    if m_pad != B or k_pad != K:
        x_in = jnp.pad(x, ((0, m_pad - B), (0, k_pad - K)))
    else:
        x_in = x

    grid = (m_pad // tm, t_pad // tn, k_pad // tk)
    grid_k = grid[2]

    if grid_k == 1:
        kernel = _adain_kernel_single
        scratch = []
    elif out_dtype == jnp.float32:
        kernel = _adain_kernel_multik_inplace
        scratch = []
    else:
        kernel = _adain_kernel_multik_scratch
        scratch = [pltpu.VMEM((tm, tn), jnp.float32),
                   pltpu.VMEM((tm, tn), jnp.float32)]

    out_w, out_b = pl.pallas_call(
        kernel,
        out_shape=(
            jax.ShapeDtypeStruct((m_pad, t_pad), out_dtype),
            jax.ShapeDtypeStruct((m_pad, t_pad), out_dtype),
        ),
        grid_spec=pltpu.PrefetchScalarGridSpec(
            num_scalar_prefetch=0,
            grid=grid,
            in_specs=[
                pl.BlockSpec((tm, tk), lambda i, j, k: (i, k)),   # x (shared by halves)
                pl.BlockSpec((tk, tn), lambda i, j, k: (k, j)),   # W, 'weight' half
                pl.BlockSpec((tk, tn), lambda i, j, k: (k, j)),   # W, 'bias' half
                pl.BlockSpec((1, tn), lambda i, j, k: (0, j)),    # b, 'weight' half
                pl.BlockSpec((1, tn), lambda i, j, k: (0, j)),    # b, 'bias' half
            ],
            out_specs=[
                pl.BlockSpec((tm, tn), lambda i, j, k: (i, j)),
                pl.BlockSpec((tm, tn), lambda i, j, k: (i, j)),
            ],
            scratch_shapes=scratch,
        ),
        compiler_params=pltpu.CompilerParams(
            dimension_semantics=("parallel", "parallel", "arbitrary"),
            vmem_limit_bytes=_VMEM_LIMIT_BYTES),
    )(x_in, params.ww, params.wb, params.bw, params.bb)

    if m_pad != B or t_pad != T:
        out_w = out_w[:B, :T]
        out_b = out_b[:B, :T]
    return {"weight": out_w, "bias": out_b}


def adain_linear(x, weight, bias, *, compute_dtype=jnp.bfloat16, out_dtype=None):
    """One-shot convenience wrapper (prep + apply). For repeated calls with the
    same parameters, call prepare_adain_params once and reuse the result."""
    params = prepare_adain_params(weight, bias, compute_dtype=compute_dtype)
    return adain_linear_apply(params, x, out_dtype=out_dtype)


# ---------------------------------------------------------------------------
# Reference + tests
# ---------------------------------------------------------------------------

def _reference(x, weight, bias):
    """Plain-JAX reference with the same bf16-input / f32-accumulate contract."""
    y = jnp.dot(x.astype(jnp.bfloat16), weight.T.astype(jnp.bfloat16),
                preferred_element_type=jnp.float32)
    y = jnp.maximum(y + bias.astype(jnp.float32), 0.0).astype(x.dtype)
    T = y.shape[1] // 2
    return {"weight": y[:, :T], "bias": y[:, T:]}


def _run_case(key, B, in_units, target_units):
    two_t = 2 * target_units
    kx, kw, kb = jax.random.split(key, 3)
    bound = in_units ** -0.5
    x = jax.random.normal(kx, (B, in_units), dtype=jnp.float32)
    weight = jax.random.uniform(kw, (two_t, in_units), jnp.float32, -bound, bound)
    bias = jax.random.uniform(kb, (two_t,), jnp.float32, -bound, bound)

    # Prep is hoisted: done once per parameter update, reused across calls.
    params = prepare_adain_params(weight, bias)
    out = adain_linear_apply(params, x)
    jax.block_until_ready(out)

    ref = _reference(x, weight, bias)
    assert out["weight"].shape == (B, target_units)
    assert out["bias"].shape == (B, target_units)
    assert jnp.allclose(out["weight"], ref["weight"], atol=2e-2, rtol=2e-2)
    assert jnp.allclose(out["bias"], ref["bias"], atol=2e-2, rtol=2e-2)


if __name__ == "__main__":
    key = jax.random.PRNGKey(0)
    k1, k2 = jax.random.split(key)

    # Small shapes consistent with the module (batch=2, in_units=32, T=16):
    # single-tile grid, padded to lane-dense (8, 128) blocks, single K step.
    _run_case(k1, B=2, in_units=32, target_units=16)

    # Aligned production-like shapes (B=128, K=1024, T=256): full-K single-step
    # reduction (grid (1, 2, 1)), two parallel N blocks for v7x megacore, no
    # padding or post-kernel slicing, no scratch accumulators.
    _run_case(k2, B=128, in_units=1024, target_units=256)

    print("KERNEL_OK")
</pallas_src>

<mosaic_0001>
module attributes {stable_mosaic.version = 11 : i64} {
  func.func @_adain_kernel_single(%arg0: i32, %arg1: i32, %arg2: i32, %arg3: memref<8x128xf32, #tpu.memory_space<vmem>>, %arg4: memref<128x128xbf16, #tpu.memory_space<vmem>>, %arg5: memref<128x128xbf16, #tpu.memory_space<vmem>>, %arg6: memref<1x128xf32, #tpu.memory_space<vmem>>, %arg7: memref<1x128xf32, #tpu.memory_space<vmem>>, %arg8: memref<8x128xf32, #tpu.memory_space<vmem>>, %arg9: memref<8x128xf32, #tpu.memory_space<vmem>>) attributes {dimension_semantics = [#tpu.dimension_semantics<parallel>, #tpu.dimension_semantics<parallel>, #tpu.dimension_semantics<arbitrary>], iteration_bounds = array<i64: 1, 1, 1>, scalar_prefetch = 0 : i64, scratch_operands = 0 : i64, tpu.core_type = #tpu.core_type<tc>, window_params = [{transform_indices = @transform_0, window_bounds = array<i64: 8, 128>}, {transform_indices = @transform_1, window_bounds = array<i64: 128, 128>}, {transform_indices = @transform_2, window_bounds = array<i64: 128, 128>}, {transform_indices = @transform_3, window_bounds = array<i64: 1, 128>}, {transform_indices = @transform_4, window_bounds = array<i64: 1, 128>}, {transform_indices = @transform_5, window_bounds = array<i64: 8, 128>}, {transform_indices = @transform_6, window_bounds = array<i64: 8, 128>}]} {
    %c0 = arith.constant 0 : index
    %c0_0 = arith.constant 0 : index
    %0 = vector.load %arg3[%c0, %c0_0] : memref<8x128xf32, #tpu.memory_space<vmem>>, vector<8x128xf32>
    %1 = arith.truncf %0 : vector<8x128xf32> to vector<8x128xbf16>
    %c0_1 = arith.constant 0 : index
    %c0_2 = arith.constant 0 : index
    %2 = vector.load %arg4[%c0_1, %c0_2] : memref<128x128xbf16, #tpu.memory_space<vmem>>, vector<128x128xbf16>
    %cst = arith.constant dense<0.000000e+00> : vector<8x128xf32>
    %3 = tpu.matmul %1, %2, %cst {dimension_numbers = #tpu.dot_dimension_numbers<[1], [0], [0], [1], [0, 0, 1, 1], [], []>} : vector<8x128xbf16>, vector<128x128xbf16>, vector<8x128xf32> -> vector<8x128xf32>
    %c0_3 = arith.constant 0 : index
    %c0_4 = arith.constant 0 : index
    %4 = vector.load %arg5[%c0_3, %c0_4] : memref<128x128xbf16, #tpu.memory_space<vmem>>, vector<128x128xbf16>
    %cst_5 = arith.constant dense<0.000000e+00> : vector<8x128xf32>
    %5 = tpu.matmul %1, %4, %cst_5 {dimension_numbers = #tpu.dot_dimension_numbers<[1], [0], [0], [1], [0, 0, 1, 1], [], []>} : vector<8x128xbf16>, vector<128x128xbf16>, vector<8x128xf32> -> vector<8x128xf32>
    %c0_6 = arith.constant 0 : index
    %c0_7 = arith.constant 0 : index
    %6 = vector.load %arg6[%c0_6, %c0_7] : memref<1x128xf32, #tpu.memory_space<vmem>>, vector<1x128xf32>
    %7 = vector.broadcast %6 : vector<1x128xf32> to vector<8x128xf32>
    %8 = arith.addf %3, %7 : vector<8x128xf32>
    %cst_8 = arith.constant 0.000000e+00 : f32
    %9 = vector.broadcast %cst_8 : f32 to vector<8x128xf32>
    %10 = arith.maximumf %8, %9 : vector<8x128xf32>
    %c0_9 = arith.constant 0 : index
    %c0_10 = arith.constant 0 : index
    %11 = vector.load %arg8[%c0_9, %c0_10] : memref<8x128xf32, #tpu.memory_space<vmem>>, vector<8x128xf32>
    tpu.vector_store %arg8[%c0_9, %c0_10], %10 {strides = array<i32>} : memref<8x128xf32, #tpu.memory_space<vmem>>, vector<8x128xf32>,
    %c0_11 = arith.constant 0 : index
    %c0_12 = arith.constant 0 : index
    %12 = vector.load %arg7[%c0_11, %c0_12] : memref<1x128xf32, #tpu.memory_space<vmem>>, vector<1x128xf32>
    %13 = vector.broadcast %12 : vector<1x128xf32> to vector<8x128xf32>
    %14 = arith.addf %5, %13 : vector<8x128xf32>
    %cst_13 = arith.constant 0.000000e+00 : f32
    %15 = vector.broadcast %cst_13 : f32 to vector<8x128xf32>
    %16 = arith.maximumf %14, %15 : vector<8x128xf32>
    %c0_14 = arith.constant 0 : index
    %c0_15 = arith.constant 0 : index
    %17 = vector.load %arg9[%c0_14, %c0_15] : memref<8x128xf32, #tpu.memory_space<vmem>>, vector<8x128xf32>
    tpu.vector_store %arg9[%c0_14, %c0_15], %16 {strides = array<i32>} : memref<8x128xf32, #tpu.memory_space<vmem>>, vector<8x128xf32>,
    return
  }
  func.func @transform_0(%arg0: i32, %arg1: i32, %arg2: i32) -> (i32, i32) {
    %c0_i32 = arith.constant 0 : i32
    return %arg0, %arg2 : i32, i32
  }
  func.func @transform_1(%arg0: i32, %arg1: i32, %arg2: i32) -> (i32, i32) {
    %c0_i32 = arith.constant 0 : i32
    return %arg2, %arg1 : i32, i32
  }
  func.func @transform_2(%arg0: i32, %arg1: i32, %arg2: i32) -> (i32, i32) {
    %c0_i32 = arith.constant 0 : i32
    return %arg2, %arg1 : i32, i32
  }
  func.func @transform_3(%arg0: i32, %arg1: i32, %arg2: i32) -> (i32, i32) {
    %c0_i32 = arith.constant 0 : i32
    %c0_i32_0 = arith.constant 0 : i32
    return %c0_i32, %arg1 : i32, i32
  }
  func.func @transform_4(%arg0: i32, %arg1: i32, %arg2: i32) -> (i32, i32) {
    %c0_i32 = arith.constant 0 : i32
    %c0_i32_0 = arith.constant 0 : i32
    return %c0_i32, %arg1 : i32, i32
  }
  func.func @transform_5(%arg0: i32, %arg1: i32, %arg2: i32) -> (i32, i32) {
    %c0_i32 = arith.constant 0 : i32
    return %arg0, %arg1 : i32, i32
  }
  func.func @transform_6(%arg0: i32, %arg1: i32, %arg2: i32) -> (i32, i32) {
    %c0_i32 = arith.constant 0 : i32
    return %arg0, %arg1 : i32, i32
  }
}

</mosaic_0001>

<llo_original>
// kernel: tpu_custom_call.1
$region0: #{tpu_custom_call.1}
  #allocation0 [shape = 'u32[]', space=smem, size = 0x4, offset = 0x4, fixed_abs, tag = 'smem constant byte address 0x4 - core index']
  #allocation1 [shape = 'u32[72,128]{1,0:T(1,128)}', space=vmem, size = 0x9000, scoped, tag = 'internal scratch']
  %s0 = inlined_call_operand.hbm [shape: f32[8,128], index: 0, kind: input, shape index: {}]
  %s1 = inlined_call_operand.hbm [shape: bf16[128,128], index: 1, kind: input, shape index: {}]
  %s2 = inlined_call_operand.hbm [shape: bf16[128,128], index: 2, kind: input, shape index: {}]
  %s3 = inlined_call_operand.vmem [shape: f32[1,128], index: 3, kind: input, shape index: {}]
  %s4 = inlined_call_operand.vmem [shape: f32[1,128], index: 4, kind: input, shape index: {}]
  %s5 = inlined_call_operand.hbm [shape: f32[8,128], index: 5, kind: output, shape index: {0}]
  %s6 = inlined_call_operand.hbm [shape: f32[8,128], index: 6, kind: output, shape index: {1}]
  %7 = xla_tuple %s5, %s6
  %s8 = sld [smem:[#allocation0]]
  $region50: #{tpu_custom_call.1} parent=0
    _
  %s10 = ssub.s32 1, %s8
  %s11 = scalar_select 0, %s10, %s8
  $region1: #{tpu_custom_call.1} parent=0
    #allocation2 [shape = 'u8[4096]{0}', space=vmem, size = 0x1000, scoped, tag = 'input window, operand 0, single buffered']
    #allocation3 [shape = 's32[1]{0}', space=sflag, size = 0x4, scoped, tag = 'scoped memory for tpu_custom_call.1']
    #allocation4 [shape = 's32[1]{0}', space=sflag, size = 0x4, scoped, tag = 'scoped memory for tpu_custom_call.1']
    #allocation5 [shape = 'u8[32768]{0}', space=vmem, size = 0x8000, scoped, tag = 'input window, operand 1, single buffered']
    #allocation6 [shape = 's32[1]{0}', space=sflag, size = 0x4, scoped, tag = 'scoped memory for tpu_custom_call.1']
    #allocation7 [shape = 'u8[32768]{0}', space=vmem, size = 0x8000, scoped, tag = 'input window, operand 2, single buffered']
    #allocation8 [shape = 'u8[4096]{0}', space=vmem, size = 0x1000, scoped, tag = 'output window, operand 0, single buffered']
    #allocation9 [shape = 'u8[4096]{0}', space=vmem, size = 0x1000, scoped, tag = 'output window, operand 1, single buffered']
    #allocation10 [shape = 's32[1]{0}', space=sflag, size = 0x4, scoped, tag = 'scoped memory for tpu_custom_call.1']
    %12 = vsyncpa [#allocation3], 0
    %13 = vsyncpa [#allocation6], 0
    %14 = vsyncpa [#allocation4], 0
    %15 = vsyncpa [#allocation10], 0
    // Predicated region
    $region2: #{tpu_custom_call.1} parent=1 // pred_check
      _
    $region3: #{tpu_custom_call.1} parent=1 // pred_check_branch
      %17 = sbr.rel (0) target = $region5
    $region4: #{tpu_custom_call.1} parent=1 // pred_region
      %19 = vsyncadd [#allocation3], 0
      %s21 = sshll.u32 %s0, 4
      %s22 = int_to_ptr.hbm [resolvable:$true] %s21
      %s23 = sshll.u32 [#allocation2], 4
      %s24 = int_to_ptr.vmem [resolvable:$true] %s23
      %26 = dma.hbm_to_vmem [thread:$0]  %s22, 128, %s24, [#allocation3]
    $region5: #{tpu_custom_call.1} parent=1 // pred_fallthru
      _
    // Predicated region
    $region6: #{tpu_custom_call.1} parent=1 // pred_check
      _
    $region7: #{tpu_custom_call.1} parent=1 // pred_check_branch
      %28 = sbr.rel (0) target = $region9
    $region8: #{tpu_custom_call.1} parent=1 // pred_region
      %30 = vsyncadd [#allocation6], 0
      %s31 = sshll.u32 %s1, 4
      %s32 = int_to_ptr.hbm [resolvable:$true] %s31
      %s33 = sshll.u32 [#allocation5], 4
      %s34 = int_to_ptr.vmem [resolvable:$true] %s33
      %39 = dma.hbm_to_vmem [thread:$0]  %s32, 1024, %s34, [#allocation6], 64, 64, 4
    $region9: #{tpu_custom_call.1} parent=1 // pred_fallthru
      _
    // Predicated region
    $region10: #{tpu_custom_call.1} parent=1 // pred_check
      _
    $region11: #{tpu_custom_call.1} parent=1 // pred_check_branch
      %41 = sbr.rel (0) target = $region13
    $region12: #{tpu_custom_call.1} parent=1 // pred_region
      %43 = vsyncadd [#allocation6], 0
      %s44 = sshll.u32 %s2, 4
      %s45 = int_to_ptr.hbm [resolvable:$true] %s44
      %s46 = sshll.u32 [#allocation7], 4
      %s47 = int_to_ptr.vmem [resolvable:$true] %s46
      %52 = dma.hbm_to_vmem [thread:$0]  %s45, 1024, %s47, [#allocation6], 64, 64, 4
    $region13: #{tpu_custom_call.1} parent=1 // pred_fallthru
      _
    // Predicated region
    $region14: #{tpu_custom_call.1} parent=1 // pred_check
      _
    $region15: #{tpu_custom_call.1} parent=1 // pred_check_branch
      %54 = sbr.rel (0) target = $region17
    $region16: #{tpu_custom_call.1} parent=1 // pred_region
      _
    $region17: #{tpu_custom_call.1} parent=1 // pred_fallthru
      _
    // Predicated region
    $region18: #{tpu_custom_call.1} parent=1 // pred_check
      _
    $region19: #{tpu_custom_call.1} parent=1 // pred_check_branch
      %56 = sbr.rel (0) target = $region21
    $region20: #{tpu_custom_call.1} parent=1 // pred_region
      _
    $region21: #{tpu_custom_call.1} parent=1 // pred_fallthru
      _
    // Predicated region
    $region22: #{tpu_custom_call.1} parent=1 // pred_check
      _
    $region23: #{tpu_custom_call.1} parent=1 // pred_check_branch
      %58 = sbr.rel (0) target = $region25
    $region24: #{tpu_custom_call.1} parent=1 // pred_region
      %60 = dma.done [#allocation3], 128
    $region25: #{tpu_custom_call.1} parent=1 // pred_fallthru
      _
    // Predicated region
    $region26: #{tpu_custom_call.1} parent=1 // pred_check
      _
    $region27: #{tpu_custom_call.1} parent=1 // pred_check_branch
      %62 = sbr.rel (0) target = $region29
    $region28: #{tpu_custom_call.1} parent=1 // pred_region
      %64 = dma.done [#allocation6], 1024
    $region29: #{tpu_custom_call.1} parent=1 // pred_fallthru
      _
    // Predicated region
    $region30: #{tpu_custom_call.1} parent=1 // pred_check
      _
    $region31: #{tpu_custom_call.1} parent=1 // pred_check_branch
      %66 = sbr.rel (0) target = $region33
    $region32: #{tpu_custom_call.1} parent=1 // pred_region
      %68 = dma.done [#allocation6], 1024
    $region33: #{tpu_custom_call.1} parent=1 // pred_fallthru
      _
    %v69 = vld [vmem:[#allocation2] sm:$0xff]
    %v70 = vpack.c.bf16 %v69, %v69
    %v71 = vld [vmem:[#allocation5] sm:$0xf]
    %v72 = vld [vmem:[#allocation5 + $0x4] sm:$0xf]
    %v73 = vld [vmem:[#allocation5 + $0x8] sm:$0xf]
    %v74 = vld [vmem:[#allocation5 + $0xc] sm:$0xf]
    %v75 = vld [vmem:[#allocation5 + $0x10] sm:$0xf]
    %v76 = vld [vmem:[#allocation5 + $0x14] sm:$0xf]
    %v77 = vld [vmem:[#allocation5 + $0x18] sm:$0xf]
    %v78 = vld [vmem:[#allocation5 + $0x1c] sm:$0xf]
    %v79 = vld [vmem:[#allocation5 + $0x20] sm:$0xf]
    %v80 = vld [vmem:[#allocation5 + $0x24] sm:$0xf]
    %v81 = vld [vmem:[#allocation5 + $0x28] sm:$0xf]
    %v82 = vld [vmem:[#allocation5 + $0x2c] sm:$0xf]
    %v83 = vld [vmem:[#allocation5 + $0x30] sm:$0xf]
    %v84 = vld [vmem:[#allocation5 + $0x34] sm:$0xf]
    %v85 = vld [vmem:[#allocation5 + $0x38] sm:$0xf]
    %v86 = vld [vmem:[#allocation5 + $0x3c] sm:$0xf]
    %v87 = vld [vmem:[#allocation7] sm:$0xf]
    %v88 = vld [vmem:[#allocation7 + $0x4] sm:$0xf]
    %v89 = vld [vmem:[#allocation7 + $0x8] sm:$0xf]
    %v90 = vld [vmem:[#allocation7 + $0xc] sm:$0xf]
    %v91 = vld [vmem:[#allocation7 + $0x10] sm:$0xf]
    %v92 = vld [vmem:[#allocation7 + $0x14] sm:$0xf]
    %v93 = vld [vmem:[#allocation7 + $0x18] sm:$0xf]
    %v94 = vld [vmem:[#allocation7 + $0x1c] sm:$0xf]
    %v95 = vld [vmem:[#allocation7 + $0x20] sm:$0xf]
    %v96 = vld [vmem:[#allocation7 + $0x24] sm:$0xf]
    %v97 = vld [vmem:[#allocation7 + $0x28] sm:$0xf]
    %v98 = vld [vmem:[#allocation7 + $0x2c] sm:$0xf]
    %v99 = vld [vmem:[#allocation7 + $0x30] sm:$0xf]
    %v100 = vld [vmem:[#allocation7 + $0x34] sm:$0xf]
    %v101 = vld [vmem:[#allocation7 + $0x38] sm:$0xf]
    %v102 = vld [vmem:[#allocation7 + $0x3c] sm:$0xf]
    %v103 = vld [vmem:[%s3] sm:$0x1]
    %v105 = vperm.slane %v103, 0
    %v123 = vunpack.c.l.b16 %v71
    %v124 = vunpack.c.l.b16 %v72
    %v125 = vunpack.c.l.b16 %v73
    %v126 = vunpack.c.l.b16 %v74
    %v127 = vunpack.c.l.b16 %v75
    %v128 = vunpack.c.l.b16 %v76
    %v129 = vunpack.c.l.b16 %v77
    %v130 = vunpack.c.l.b16 %v78
    %v131 = vunpack.c.l.b16 %v79
    %v132 = vunpack.c.l.b16 %v80
    %v133 = vunpack.c.l.b16 %v81
    %v134 = vunpack.c.l.b16 %v82
    %v135 = vunpack.c.l.b16 %v83
    %v136 = vunpack.c.l.b16 %v84
    %v137 = vunpack.c.l.b16 %v85
    %v138 = vunpack.c.l.b16 %v86
    %v139 = vpack.c.b16 %v124, %v123
    %v140 = vpack.c.b16 %v126, %v125
    %v141 = vpack.c.b16 %v128, %v127
    %v142 = vpack.c.b16 %v130, %v129
    %v143 = vpack.c.b16 %v132, %v131
    %v144 = vpack.c.b16 %v134, %v133
    %v145 = vpack.c.b16 %v136, %v135
    %v146 = vpack.c.b16 %v138, %v137
    %155 = vmatpush.bf16.msra.mxu0 %v146
    %156 = vmatpush.bf16.msra.mxu0 %v145
    %157 = vmatpush.bf16.msra.mxu0 %v144
    %158 = vmatpush.bf16.msra.mxu0 %v143
    %159 = vmatpush.bf16.msra.mxu0 %v142
    %160 = vmatpush.bf16.msra.mxu0 %v141
    %161 = vmatpush.bf16.msra.mxu0 %v140
    %162 = vmatpush.bf16.msra.mxu0 %v139
    %163 = vmatmul.bf16.gmra.mxu0 %v70
    %v164 = vpop.f32.mrf.mxu0
    %v165 = vadd.f32 %v105, %v164
    %v166 = vpop.f32.mrf.mxu0
    %167 = vdwg.mxu0
    %v168 = vmax.f32 %v165, 0.0
    %169 = vst [vmem:[#allocation8] sm:$0xff] %v168
    %v170 = vld [vmem:[%s4] sm:$0x1]
    %v172 = vperm.slane %v170, 0
    %v190 = vunpack.c.l.b16 %v87
    %v191 = vunpack.c.l.b16 %v88
    %v192 = vunpack.c.l.b16 %v89
    %v193 = vunpack.c.l.b16 %v90
    %v194 = vunpack.c.l.b16 %v91
    %v195 = vunpack.c.l.b16 %v92
    %v196 = vunpack.c.l.b16 %v93
    %v197 = vunpack.c.l.b16 %v94
    %v198 = vunpack.c.l.b16 %v95
    %v199 = vunpack.c.l.b16 %v96
    %v200 = vunpack.c.l.b16 %v97
    %v201 = vunpack.c.l.b16 %v98
    %v202 = vunpack.c.l.b16 %v99
    %v203 = vunpack.c.l.b16 %v100
    %v204 = vunpack.c.l.b16 %v101
    %v205 = vunpack.c.l.b16 %v102
    %v206 = vpack.c.b16 %v191, %v190
    %v207 = vpack.c.b16 %v193, %v192
    %v208 = vpack.c.b16 %v195, %v194
    %v209 = vpack.c.b16 %v197, %v196
    %v210 = vpack.c.b16 %v199, %v198
    %v211 = vpack.c.b16 %v201, %v200
    %v212 = vpack.c.b16 %v203, %v202
    %v213 = vpack.c.b16 %v205, %v204
    %222 = vmatpush.bf16.msra.mxu0 %v213
    %223 = vmatpush.bf16.msra.mxu0 %v212
    %224 = vmatpush.bf16.msra.mxu0 %v211
    %225 = vmatpush.bf16.msra.mxu0 %v210
    %226 = vmatpush.bf16.msra.mxu0 %v209
    %227 = vmatpush.bf16.msra.mxu0 %v208
    %228 = vmatpush.bf16.msra.mxu0 %v207
    %229 = vmatpush.bf16.msra.mxu0 %v206
    %230 = vmatmul.bf16.gmra.mxu0 %v70
    %v231 = vpop.f32.mrf.mxu0
    %v232 = vadd.f32 %v172, %v231
    %v233 = vpop.f32.mrf.mxu0
    %234 = vdwg.mxu0
    %v235 = vmax.f32 %v232, 0.0
    %236 = vst [vmem:[#allocation9] sm:$0xff] %v235
    // Predicated region
    $region34: #{tpu_custom_call.1} parent=1 // pred_check
      _
    $region35: #{tpu_custom_call.1} parent=1 // pred_check_branch
      %238 = sbr.rel (0) target = $region37
    $region36: #{tpu_custom_call.1} parent=1 // pred_region
      %240 = vsyncadd [#allocation4], 0
      %s242 = sshll.u32 [#allocation8], 4
      %s243 = int_to_ptr.vmem [resolvable:$true] %s242
      %s244 = sshll.u32 %s5, 4
      %s245 = int_to_ptr.hbm [resolvable:$true] %s244
      %247 = dma.vmem_to_hbm [thread:$0]  %s243, 128, %s245, [#allocation4]
    $region37: #{tpu_custom_call.1} parent=1 // pred_fallthru
      _
    // Predicated region
    $region38: #{tpu_custom_call.1} parent=1 // pred_check
      _
    $region39: #{tpu_custom_call.1} parent=1 // pred_check_branch
      %249 = sbr.rel (0) target = $region41
    $region40: #{tpu_custom_call.1} parent=1 // pred_region
      %251 = vsyncadd [#allocation10], 0
      %s253 = sshll.u32 [#allocation9], 4
      %s254 = int_to_ptr.vmem [resolvable:$true] %s253
      %s255 = sshll.u32 %s6, 4
      %s256 = int_to_ptr.hbm [resolvable:$true] %s255
      %258 = dma.vmem_to_hbm [thread:$0]  %s254, 128, %s256, [#allocation10]
    $region41: #{tpu_custom_call.1} parent=1 // pred_fallthru
      _
    // Predicated region
    $region42: #{tpu_custom_call.1} parent=1 // pred_check
      _
    $region43: #{tpu_custom_call.1} parent=1 // pred_check_branch
      %260 = sbr.rel (0) target = $region45
    $region44: #{tpu_custom_call.1} parent=1 // pred_region
      %262 = dma.done [#allocation4], 128
    $region45: #{tpu_custom_call.1} parent=1 // pred_fallthru
      _
    // Predicated region
    $region46: #{tpu_custom_call.1} parent=1 // pred_check
      _
    $region47: #{tpu_custom_call.1} parent=1 // pred_check_branch
      %264 = sbr.rel (0) target = $region49
    $region48: #{tpu_custom_call.1} parent=1 // pred_region
      %266 = dma.done [#allocation10], 128
    $region49: #{tpu_custom_call.1} parent=1 // pred_fallthru
      _
    %267 = vsyncpa [#allocation3], 1
    %268 = vsyncpa [#allocation6], 1
    %269 = vsyncpa [#allocation4], 1
    %270 = vsyncpa [#allocation10], 1

</llo_original>
